<compile_context>
chip_gen: v7x
topology: tpu7x:2x2x1
jax: 0.10.0
libtpu: 0.0.40
codegen_flags: <defaults>
</compile_context>

<pallas_src>
import jax
import jax.numpy as jnp
from jax.experimental import pallas as pl
from jax.experimental.pallas import tpu as pltpu

HIDDEN = 64        # logical hidden width of the PyTorch module
HIDDEN_PAD = 128   # padded to a full lane width (do NOT pad to 256 -- no MXU win)
BATCH_TILE = 2048  # batch rows per grid step (sweep 2048-4096; 2048 keeps v7x headroom)


def _critic_kernel(s_ref, a_ref, w1_ref, b1_ref, w2_ref, b2_ref, w3_ref, b3_ref,
                   o_ref):
    # s_ref:  [TB, S] f32     a_ref: [TB, A] f32
    # w1_ref: [S+A, H] bf16   b1_ref:[1, H]  f32
    # w2_ref: [H, H]  bf16    b2_ref:[1, H]  f32
    # w3_ref: [1, H]  f32     b3_ref:[1, 1]  f32
    # o_ref:  [TB, 1] f32
    #
    # fc1: in-kernel lane concat -> one MXU matmul instead of two.
    x = jnp.concatenate([s_ref[...], a_ref[...]], axis=1).astype(jnp.bfloat16)
    h1 = jnp.dot(x, w1_ref[...], preferred_element_type=jnp.float32)
    h1 = jnp.maximum(h1 + b1_ref[...], 0.0)

    # fc2
    h2 = jnp.dot(h1.astype(jnp.bfloat16), w2_ref[...],
                 preferred_element_type=jnp.float32)
    h2 = jnp.maximum(h2 + b2_ref[...], 0.0)

    # fc3 (N=1): VPU broadcast-mul + XLU lane reduction in f32.
    # Avoids extra MXU pushes and any transpose/relayout of the full h2 tile.
    q = jnp.sum(h2 * w3_ref[...], axis=1, keepdims=True) + b3_ref[...]
    o_ref[...] = q.astype(o_ref.dtype)


def _pick_batch_tile(batch):
    """Multiple of 128; >= 2 grid steps once the batch rounds up to >= 256."""
    b128 = ((max(batch, 1) + 127) // 128) * 128
    if b128 >= 256:
        half = ((b128 // 2 + 127) // 128) * 128
        return min(BATCH_TILE, half)
    return 128


def critic_forward(state, action, params):
    """state: [B, S] f32, action: [B, A] f32 -> q: [B, 1] f32."""
    w1, b1, w2, b2, w3, b3 = params
    B, S = state.shape
    A = action.shape[1]
    H = w2.shape[0]

    tb = _pick_batch_tile(B)
    nb = int(pl.cdiv(B, tb))
    b_pad = nb * tb          # padded output rows: all output writes in-bounds

    # Weights/biases: constant block index -> resident in VMEM across steps.
    const = lambda shape: pl.BlockSpec(shape, lambda i: (0,) * len(shape))

    q = pl.pallas_call(
        _critic_kernel,
        out_shape=jax.ShapeDtypeStruct((b_pad, 1), jnp.float32),
        grid=(nb,),
        in_specs=[
            pl.BlockSpec((tb, S), lambda i: (i, 0)),   # state tile (pipelined)
            pl.BlockSpec((tb, A), lambda i: (i, 0)),   # action tile (pipelined)
            const((S + A, H)),                         # W1 (merged)
            const((1, H)),                             # b1
            const((H, H)),                             # W2
            const((1, H)),                             # b2
            const((1, H)),                             # W3 (row vector, f32)
            const((1, 1)),                             # b3
        ],
        out_specs=pl.BlockSpec((tb, 1), lambda i: (i, 0)),
        compiler_params=pltpu.CompilerParams(
            dimension_semantics=("parallel",)),
    )(state, action, w1, b1, w2, b2, w3, b3)

    return q[:B]


def init_critic_params(key, state_size, action_size):
    """nn.Linear-style init U(-1/sqrt(fan_in), 1/sqrt(fan_in)).

    Returns (kernel_params, raw_params):
      kernel_params: hidden padded 64->128, bf16 matmul weights, f32 biases/W3.
      raw_params:    unpadded f32 tensors (for the reference check).
    """
    def lin(k, fan_in, fan_out):
        kw, kb = jax.random.split(k)
        bound = 1.0 / jnp.sqrt(float(fan_in))
        w = jax.random.uniform(kw, (fan_in, fan_out), jnp.float32, -bound, bound)
        b = jax.random.uniform(kb, (fan_out,), jnp.float32, -bound, bound)
        return w, b

    k1, k2, k3 = (jax.random.fold_in(key, i) for i in range(3))
    w1, b1 = lin(k1, state_size + action_size, HIDDEN)   # [S+A, 64], [64]
    w2, b2 = lin(k2, HIDDEN, HIDDEN)                      # [64, 64],  [64]
    w3, b3 = lin(k3, HIDDEN, 1)                           # [64, 1],   [1]

    P = HIDDEN_PAD - HIDDEN
    bf = jnp.bfloat16
    w1p = jnp.pad(w1, ((0, 0), (0, P))).astype(bf)          # [S+A, 128]
    b1p = jnp.pad(b1, (0, P)).reshape(1, HIDDEN_PAD)        # f32
    w2p = jnp.pad(w2, ((0, P), (0, P))).astype(bf)          # [128, 128]
    b2p = jnp.pad(b2, (0, P)).reshape(1, HIDDEN_PAD)        # f32
    w3p = jnp.pad(w3[:, 0], (0, P)).reshape(1, HIDDEN_PAD)  # f32 row vector
    b3p = b3.reshape(1, 1)                                  # f32

    kernel_params = (w1p, b1p, w2p, b2p, w3p, b3p)
    raw_params = (w1, b1, w2, b2, w3, b3)
    return kernel_params, raw_params


if __name__ == "__main__":
    key = jax.random.PRNGKey(0)
    state_size, action_size = 16, 4

    params, raw = init_critic_params(jax.random.fold_in(key, 123),
                                     state_size, action_size)
    w1, b1, w2, b2, w3, b3 = raw

    def bdot(a, b):  # emulate the kernel's bf16-input / f32-accum matmuls
        return jnp.dot(a.astype(jnp.bfloat16), b.astype(jnp.bfloat16),
                       preferred_element_type=jnp.float32)

    def reference_emu(state, action):
        x = jnp.concatenate([state, action], axis=1)
        h1 = jnp.maximum(bdot(x, w1) + b1, 0.0)
        h2 = jnp.maximum(bdot(h1, w2) + b2, 0.0)
        return jnp.sum(h2 * w3[:, 0], axis=1, keepdims=True) + b3  # fc3 in f32

    def reference_f32(state, action):
        x = jnp.concatenate([state, action], axis=1)
        h1 = jnp.maximum(x @ w1 + b1, 0.0)
        h2 = jnp.maximum(h1 @ w2 + b2, 0.0)
        return h2 @ w3 + b3

    # batch=2: single tile with a partial block (block reads past B).
    # batch=300: 2 grid steps (megacore path) with a partial last block.
    for batch in (2, 300):
        ks, ka = jax.random.split(jax.random.fold_in(key, batch))
        state = jax.random.normal(ks, (batch, state_size), jnp.float32)
        action = jax.random.normal(ka, (batch, action_size), jnp.float32)

        q = critic_forward(state, action, params)
        jax.block_until_ready(q)
        assert q.shape == (batch, 1), q.shape

        ref_e = reference_emu(state, action)
        assert jnp.allclose(q, ref_e, atol=1e-2, rtol=1e-2), (
            batch, float(jnp.max(jnp.abs(q - ref_e))))

        ref_f = reference_f32(state, action)
        assert jnp.allclose(q, ref_f, atol=5e-2, rtol=5e-2), (
            batch, float(jnp.max(jnp.abs(q - ref_f))))

    print("KERNEL_OK")
</pallas_src>

<mosaic_0001>
module attributes {stable_mosaic.version = 11 : i64} {
  func.func @_critic_kernel(%arg0: i32, %arg1: memref<128x16xf32, #tpu.memory_space<vmem>>, %arg2: memref<128x4xf32, #tpu.memory_space<vmem>>, %arg3: memref<20x128xbf16, #tpu.memory_space<vmem>>, %arg4: memref<1x128xf32, #tpu.memory_space<vmem>>, %arg5: memref<128x128xbf16, #tpu.memory_space<vmem>>, %arg6: memref<1x128xf32, #tpu.memory_space<vmem>>, %arg7: memref<1x128xf32, #tpu.memory_space<vmem>>, %arg8: memref<1x1xf32, #tpu.memory_space<vmem>>, %arg9: memref<128x1xf32, #tpu.memory_space<vmem>>) attributes {dimension_semantics = [#tpu.dimension_semantics<parallel>], iteration_bounds = array<i64: 1>, scalar_prefetch = 0 : i64, scratch_operands = 0 : i64, tpu.core_type = #tpu.core_type<tc>, window_params = [{transform_indices = @transform_0, window_bounds = array<i64: 128, 16>}, {transform_indices = @transform_1, window_bounds = array<i64: 128, 4>}, {pipeline_mode = #tpu.pipeline_mode<synchronous>, transform_indices = @transform_2, window_bounds = array<i64: 20, 128>}, {pipeline_mode = #tpu.pipeline_mode<synchronous>, transform_indices = @transform_3, window_bounds = array<i64: 1, 128>}, {pipeline_mode = #tpu.pipeline_mode<synchronous>, transform_indices = @transform_4, window_bounds = array<i64: 128, 128>}, {pipeline_mode = #tpu.pipeline_mode<synchronous>, transform_indices = @transform_5, window_bounds = array<i64: 1, 128>}, {pipeline_mode = #tpu.pipeline_mode<synchronous>, transform_indices = @transform_6, window_bounds = array<i64: 1, 128>}, {pipeline_mode = #tpu.pipeline_mode<synchronous>, transform_indices = @transform_7, window_bounds = array<i64: 1, 1>}, {transform_indices = @transform_8, window_bounds = array<i64: 128, 1>}]} {
    %c0 = arith.constant 0 : index
    %c0_0 = arith.constant 0 : index
    %0 = vector.load %arg1[%c0, %c0_0] : memref<128x16xf32, #tpu.memory_space<vmem>>, vector<128x16xf32>
    %c0_1 = arith.constant 0 : index
    %c0_2 = arith.constant 0 : index
    %1 = vector.load %arg2[%c0_1, %c0_2] : memref<128x4xf32, #tpu.memory_space<vmem>>, vector<128x4xf32>
    %2 = tpu.concatenate %0, %1 in 1 : vector<128x16xf32>, vector<128x4xf32> -> vector<128x20xf32>
    %3 = arith.truncf %2 : vector<128x20xf32> to vector<128x20xbf16>
    %c0_3 = arith.constant 0 : index
    %c0_4 = arith.constant 0 : index
    %4 = vector.load %arg3[%c0_3, %c0_4] : memref<20x128xbf16, #tpu.memory_space<vmem>>, vector<20x128xbf16>
    %cst = arith.constant dense<0.000000e+00> : vector<128x128xf32>
    %5 = tpu.matmul %3, %4, %cst {dimension_numbers = #tpu.dot_dimension_numbers<[1], [0], [0], [1], [0, 0, 1, 1], [], []>} : vector<128x20xbf16>, vector<20x128xbf16>, vector<128x128xf32> -> vector<128x128xf32>
    %c0_5 = arith.constant 0 : index
    %c0_6 = arith.constant 0 : index
    %6 = vector.load %arg4[%c0_5, %c0_6] : memref<1x128xf32, #tpu.memory_space<vmem>>, vector<1x128xf32>
    %7 = vector.broadcast %6 : vector<1x128xf32> to vector<128x128xf32>
    %8 = arith.addf %5, %7 : vector<128x128xf32>
    %cst_7 = arith.constant 0.000000e+00 : f32
    %9 = vector.broadcast %cst_7 : f32 to vector<128x128xf32>
    %10 = arith.maximumf %8, %9 : vector<128x128xf32>
    %11 = arith.truncf %10 : vector<128x128xf32> to vector<128x128xbf16>
    %c0_8 = arith.constant 0 : index
    %c0_9 = arith.constant 0 : index
    %12 = vector.load %arg5[%c0_8, %c0_9] : memref<128x128xbf16, #tpu.memory_space<vmem>>, vector<128x128xbf16>
    %cst_10 = arith.constant dense<0.000000e+00> : vector<128x128xf32>
    %13 = tpu.matmul %11, %12, %cst_10 {dimension_numbers = #tpu.dot_dimension_numbers<[1], [0], [0], [1], [0, 0, 1, 1], [], []>} : vector<128x128xbf16>, vector<128x128xbf16>, vector<128x128xf32> -> vector<128x128xf32>
    %c0_11 = arith.constant 0 : index
    %c0_12 = arith.constant 0 : index
    %14 = vector.load %arg6[%c0_11, %c0_12] : memref<1x128xf32, #tpu.memory_space<vmem>>, vector<1x128xf32>
    %15 = vector.broadcast %14 : vector<1x128xf32> to vector<128x128xf32>
    %16 = arith.addf %13, %15 : vector<128x128xf32>
    %cst_13 = arith.constant 0.000000e+00 : f32
    %17 = vector.broadcast %cst_13 : f32 to vector<128x128xf32>
    %18 = arith.maximumf %16, %17 : vector<128x128xf32>
    %c0_14 = arith.constant 0 : index
    %c0_15 = arith.constant 0 : index
    %19 = vector.load %arg7[%c0_14, %c0_15] : memref<1x128xf32, #tpu.memory_space<vmem>>, vector<1x128xf32>
    %20 = vector.broadcast %19 : vector<1x128xf32> to vector<128x128xf32>
    %21 = arith.mulf %18, %20 : vector<128x128xf32>
    %cst_16 = arith.constant dense<0.000000e+00> : vector<128xf32>
    %22 = vector.multi_reduction <add>, %21, %cst_16 [1] : vector<128x128xf32> to vector<128xf32>
    %23 = vector.shape_cast %22 : vector<128xf32> to vector<128x1xf32>
    %c0_17 = arith.constant 0 : index
    %c0_18 = arith.constant 0 : index
    %24 = vector.load %arg8[%c0_17, %c0_18] : memref<1x1xf32, #tpu.memory_space<vmem>>, vector<1x1xf32>
    %25 = vector.broadcast %24 : vector<1x1xf32> to vector<128x1xf32>
    %26 = arith.addf %23, %25 : vector<128x1xf32>
    %c0_19 = arith.constant 0 : index
    %c0_20 = arith.constant 0 : index
    %27 = vector.load %arg9[%c0_19, %c0_20] : memref<128x1xf32, #tpu.memory_space<vmem>>, vector<128x1xf32>
    tpu.vector_store %arg9[%c0_19, %c0_20], %26 {strides = array<i32>} : memref<128x1xf32, #tpu.memory_space<vmem>>, vector<128x1xf32>,
    return
  }
  func.func @transform_0(%arg0: i32) -> (i32, i32) {
    %c0_i32 = arith.constant 0 : i32
    %c0_i32_0 = arith.constant 0 : i32
    return %arg0, %c0_i32 : i32, i32
  }
  func.func @transform_1(%arg0: i32) -> (i32, i32) {
    %c0_i32 = arith.constant 0 : i32
    %c0_i32_0 = arith.constant 0 : i32
    return %arg0, %c0_i32 : i32, i32
  }
  func.func @transform_2(%arg0: i32) -> (i32, i32) {
    %c0_i32 = arith.constant 0 : i32
    %c0_i32_0 = arith.constant 0 : i32
    %c0_i32_1 = arith.constant 0 : i32
    return %c0_i32, %c0_i32_0 : i32, i32
  }
  func.func @transform_3(%arg0: i32) -> (i32, i32) {
    %c0_i32 = arith.constant 0 : i32
    %c0_i32_0 = arith.constant 0 : i32
    %c0_i32_1 = arith.constant 0 : i32
    return %c0_i32, %c0_i32_0 : i32, i32
  }
  func.func @transform_4(%arg0: i32) -> (i32, i32) {
    %c0_i32 = arith.constant 0 : i32
    %c0_i32_0 = arith.constant 0 : i32
    %c0_i32_1 = arith.constant 0 : i32
    return %c0_i32, %c0_i32_0 : i32, i32
  }
  func.func @transform_5(%arg0: i32) -> (i32, i32) {
    %c0_i32 = arith.constant 0 : i32
    %c0_i32_0 = arith.constant 0 : i32
    %c0_i32_1 = arith.constant 0 : i32
    return %c0_i32, %c0_i32_0 : i32, i32
  }
  func.func @transform_6(%arg0: i32) -> (i32, i32) {
    %c0_i32 = arith.constant 0 : i32
    %c0_i32_0 = arith.constant 0 : i32
    %c0_i32_1 = arith.constant 0 : i32
    return %c0_i32, %c0_i32_0 : i32, i32
  }
  func.func @transform_7(%arg0: i32) -> (i32, i32) {
    %c0_i32 = arith.constant 0 : i32
    %c0_i32_0 = arith.constant 0 : i32
    %c0_i32_1 = arith.constant 0 : i32
    return %c0_i32, %c0_i32_0 : i32, i32
  }
  func.func @transform_8(%arg0: i32) -> (i32, i32) {
    %c0_i32 = arith.constant 0 : i32
    %c0_i32_0 = arith.constant 0 : i32
    return %arg0, %c0_i32 : i32, i32
  }
}

</mosaic_0001>

<llo_original>
// kernel: tpu_custom_call.1
$region0: #{tpu_custom_call.1}
  #allocation0 [shape = 'u32[]', space=smem, size = 0x4, offset = 0x4, fixed_abs, tag = 'smem constant byte address 0x4 - core index']
  #allocation1 [shape = 'u32[144,128]{1,0:T(1,128)}', space=vmem, size = 0x12000, scoped, tag = 'internal scratch']
  #allocation2 [shape = 'f32[1,1]{1,0:T(1,128)S(1)}', space=vmem, size = 0x200, scoped, tag = 'scoped memory for tpu_custom_call.1']
  %s0 = inlined_call_operand.vmem [shape: f32[2,16], index: 0, kind: input, shape index: {}]
  %s1 = inlined_call_operand.vmem [shape: f32[2,4], index: 1, kind: input, shape index: {}]
  %s2 = inlined_call_operand.hbm [shape: bf16[20,128], index: 2, kind: input, shape index: {}]
  %s3 = inlined_call_operand.vmem [shape: f32[1,128], index: 3, kind: input, shape index: {}]
  %s4 = inlined_call_operand.hbm [shape: bf16[128,128], index: 4, kind: input, shape index: {}]
  %s5 = inlined_call_operand.vmem [shape: f32[1,128], index: 5, kind: input, shape index: {}]
  %s6 = inlined_call_operand.vmem [shape: f32[1,128], index: 6, kind: input, shape index: {}]
  %s7 = inlined_call_operand.<no memory space> [shape: f32[1,1], index: 7, kind: input, shape index: {}]
  %s8 = inlined_call_operand.vmem [shape: f32[128,1], index: 8, kind: output, shape index: {}]
  %s9 = sld [smem:[#allocation0]]
  $region50: #{tpu_custom_call.1} parent=0
    _
  %s11 = ssub.s32 1, %s9
  %s12 = scalar_select 0, %s11, %s9
  %v13 = vstv %s7
  %14 = vst [vmem:[#allocation2] sm:$0x1] %v13
  $region1: #{tpu_custom_call.1} parent=0
    #allocation3 [shape = 'u8[6144]{0}', space=vmem, size = 0x1800, scoped, tag = 'input window, operand 2, single buffered']
    #allocation4 [shape = 's32[1]{0}', space=sflag, size = 0x4, scoped, tag = 'scoped memory for tpu_custom_call.1']
    #allocation5 [shape = 'u8[32768]{0}', space=vmem, size = 0x8000, scoped, tag = 'input window, operand 4, single buffered']
    #allocation6 [shape = 's32[1]{0}', space=sflag, size = 0x4, scoped, tag = 'scoped memory for tpu_custom_call.1']
    %15 = vsyncpa [#allocation4], 0
    %16 = vsyncpa [#allocation6], 0
    // Predicated region
    $region2: #{tpu_custom_call.1} parent=1 // pred_check
      _
    $region3: #{tpu_custom_call.1} parent=1 // pred_check_branch
      %18 = sbr.rel (0) target = $region5
    $region4: #{tpu_custom_call.1} parent=1 // pred_region
      _
    $region5: #{tpu_custom_call.1} parent=1 // pred_fallthru
      _
    // Predicated region
    $region6: #{tpu_custom_call.1} parent=1 // pred_check
      _
    $region7: #{tpu_custom_call.1} parent=1 // pred_check_branch
      %20 = sbr.rel (0) target = $region9
    $region8: #{tpu_custom_call.1} parent=1 // pred_region
      _
    $region9: #{tpu_custom_call.1} parent=1 // pred_fallthru
      _
    // Predicated region
    $region10: #{tpu_custom_call.1} parent=1 // pred_check
      _
    $region11: #{tpu_custom_call.1} parent=1 // pred_check_branch
      %22 = sbr.rel (0) target = $region13
    $region12: #{tpu_custom_call.1} parent=1 // pred_region
      %s24 = ssub.s32 192, 192
      %25 = vsyncadd [#allocation4], %s24
      %s26 = sshll.u32 [#allocation3], 4
      %s27 = int_to_ptr.vmem [resolvable:$true] %s26
      %32 = dma.hbm_to_vmem [thread:$0]  %s2, 192, %s27, [#allocation4], 64, 64, 4
    $region13: #{tpu_custom_call.1} parent=1 // pred_fallthru
      _
    // Predicated region
    $region14: #{tpu_custom_call.1} parent=1 // pred_check
      _
    $region15: #{tpu_custom_call.1} parent=1 // pred_check_branch
      %34 = sbr.rel (0) target = $region17
    $region16: #{tpu_custom_call.1} parent=1 // pred_region
      _
    $region17: #{tpu_custom_call.1} parent=1 // pred_fallthru
      _
    // Predicated region
    $region18: #{tpu_custom_call.1} parent=1 // pred_check
      _
    $region19: #{tpu_custom_call.1} parent=1 // pred_check_branch
      %36 = sbr.rel (0) target = $region21
    $region20: #{tpu_custom_call.1} parent=1 // pred_region
      %s38 = ssub.s32 1024, 1024
      %39 = vsyncadd [#allocation6], %s38
      %s40 = sshll.u32 [#allocation5], 4
      %s41 = int_to_ptr.vmem [resolvable:$true] %s40
      %46 = dma.hbm_to_vmem [thread:$0]  %s4, 1024, %s41, [#allocation6], 64, 64, 4
    $region21: #{tpu_custom_call.1} parent=1 // pred_fallthru
      _
    // Predicated region
    $region22: #{tpu_custom_call.1} parent=1 // pred_check
      _
    $region23: #{tpu_custom_call.1} parent=1 // pred_check_branch
      %48 = sbr.rel (0) target = $region25
    $region24: #{tpu_custom_call.1} parent=1 // pred_region
      _
    $region25: #{tpu_custom_call.1} parent=1 // pred_fallthru
      _
    // Predicated region
    $region26: #{tpu_custom_call.1} parent=1 // pred_check
      _
    $region27: #{tpu_custom_call.1} parent=1 // pred_check_branch
      %50 = sbr.rel (0) target = $region29
    $region28: #{tpu_custom_call.1} parent=1 // pred_region
      _
    $region29: #{tpu_custom_call.1} parent=1 // pred_fallthru
      _
    // Predicated region
    $region30: #{tpu_custom_call.1} parent=1 // pred_check
      _
    $region31: #{tpu_custom_call.1} parent=1 // pred_check_branch
      %52 = sbr.rel (0) target = $region33
    $region32: #{tpu_custom_call.1} parent=1 // pred_region
      _
    $region33: #{tpu_custom_call.1} parent=1 // pred_fallthru
      _
    // Predicated region
    $region34: #{tpu_custom_call.1} parent=1 // pred_check
      _
    $region35: #{tpu_custom_call.1} parent=1 // pred_check_branch
      %54 = sbr.rel (0) target = $region37
    $region36: #{tpu_custom_call.1} parent=1 // pred_region
      %55 = dma.done [#allocation4], 192
    $region37: #{tpu_custom_call.1} parent=1 // pred_fallthru
      _
    // Predicated region
    $region38: #{tpu_custom_call.1} parent=1 // pred_check
      _
    $region39: #{tpu_custom_call.1} parent=1 // pred_check_branch
      %57 = sbr.rel (0) target = $region41
    $region40: #{tpu_custom_call.1} parent=1 // pred_region
      %58 = dma.done [#allocation6], 1024
    $region41: #{tpu_custom_call.1} parent=1 // pred_fallthru
      _
    %v60 = vld [vmem:[%s0] sm:$0xff]
    %v61 = vld [vmem:[%s0 + $0x8] sm:$0xff]
    %v62 = vld [vmem:[%s0 + $0x10] sm:$0xff]
    %v63 = vld [vmem:[%s0 + $0x18] sm:$0xff]
    %v64 = vld [vmem:[%s0 + $0x20] sm:$0xff]
    %v65 = vld [vmem:[%s0 + $0x28] sm:$0xff]
    %v66 = vld [vmem:[%s0 + $0x30] sm:$0xff]
    %v67 = vld [vmem:[%s0 + $0x38] sm:$0xff]
    %v68 = vld [vmem:[%s0 + $0x40] sm:$0xff]
    %v69 = vld [vmem:[%s0 + $0x48] sm:$0xff]
    %v70 = vld [vmem:[%s0 + $0x50] sm:$0xff]
    %v71 = vld [vmem:[%s0 + $0x58] sm:$0xff]
    %v72 = vld [vmem:[%s0 + $0x60] sm:$0xff]
    %v73 = vld [vmem:[%s0 + $0x68] sm:$0xff]
    %v74 = vld [vmem:[%s0 + $0x70] sm:$0xff]
    %v75 = vld [vmem:[%s0 + $0x78] sm:$0xff]
    %v76 = vld [vmem:[%s1] sm:$0xff]
    %v77 = vld [vmem:[%s1 + $0x8] sm:$0xff]
    %v78 = vld [vmem:[%s1 + $0x10] sm:$0xff]
    %v79 = vld [vmem:[%s1 + $0x18] sm:$0xff]
    %v80 = vld [vmem:[%s1 + $0x20] sm:$0xff]
    %v81 = vld [vmem:[%s1 + $0x28] sm:$0xff]
    %v82 = vld [vmem:[%s1 + $0x30] sm:$0xff]
    %v83 = vld [vmem:[%s1 + $0x38] sm:$0xff]
    %v84 = vld [vmem:[%s1 + $0x40] sm:$0xff]
    %v85 = vld [vmem:[%s1 + $0x48] sm:$0xff]
    %v86 = vld [vmem:[%s1 + $0x50] sm:$0xff]
    %v87 = vld [vmem:[%s1 + $0x58] sm:$0xff]
    %v88 = vld [vmem:[%s1 + $0x60] sm:$0xff]
    %v89 = vld [vmem:[%s1 + $0x68] sm:$0xff]
    %v90 = vld [vmem:[%s1 + $0x70] sm:$0xff]
    %v91 = vld [vmem:[%s1 + $0x78] sm:$0xff]
    %108 = vrot.lane.b32.xlu0 %v76, 16
    %v109 = vpop.permute.xlu0 %108
    %110 = vrot.lane.b32.xlu0 %v77, 16
    %v111 = vpop.permute.xlu0 %110
    %112 = vrot.lane.b32.xlu0 %v78, 16
    %v113 = vpop.permute.xlu0 %112
    %114 = vrot.lane.b32.xlu0 %v79, 16
    %v115 = vpop.permute.xlu0 %114
    %116 = vrot.lane.b32.xlu0 %v80, 16
    %v117 = vpop.permute.xlu0 %116
    %118 = vrot.lane.b32.xlu0 %v81, 16
    %v119 = vpop.permute.xlu0 %118
    %120 = vrot.lane.b32.xlu0 %v82, 16
    %v121 = vpop.permute.xlu0 %120
    %122 = vrot.lane.b32.xlu0 %v83, 16
    %v123 = vpop.permute.xlu0 %122
    %124 = vrot.lane.b32.xlu0 %v84, 16
    %v125 = vpop.permute.xlu0 %124
    %126 = vrot.lane.b32.xlu0 %v85, 16
    %v127 = vpop.permute.xlu0 %126
    %128 = vrot.lane.b32.xlu0 %v86, 16
    %v129 = vpop.permute.xlu0 %128
    %130 = vrot.lane.b32.xlu0 %v87, 16
    %v131 = vpop.permute.xlu0 %130
    %132 = vrot.lane.b32.xlu0 %v88, 16
    %v133 = vpop.permute.xlu0 %132
    %134 = vrot.lane.b32.xlu0 %v89, 16
    %v135 = vpop.permute.xlu0 %134
    %136 = vrot.lane.b32.xlu0 %v90, 16
    %v137 = vpop.permute.xlu0 %136
    %138 = vrot.lane.b32.xlu0 %v91, 16
    %v139 = vpop.permute.xlu0 %138
    %vm156 = vcmask 130048
    %v157 = vsel %vm156, %v60, %v109
    %v158 = vsel %vm156, %v61, %v111
    %v159 = vsel %vm156, %v62, %v113
    %v160 = vsel %vm156, %v63, %v115
    %v161 = vsel %vm156, %v64, %v117
    %v162 = vsel %vm156, %v65, %v119
    %v163 = vsel %vm156, %v66, %v121
    %v164 = vsel %vm156, %v67, %v123
    %v165 = vsel %vm156, %v68, %v125
    %v166 = vsel %vm156, %v69, %v127
    %v167 = vsel %vm156, %v70, %v129
    %v168 = vsel %vm156, %v71, %v131
    %v169 = vsel %vm156, %v72, %v133
    %v170 = vsel %vm156, %v73, %v135
    %v171 = vsel %vm156, %v74, %v137
    %v172 = vsel %vm156, %v75, %v139
    %v173 = vpack.c.bf16 %v158, %v157
    %v174 = vpack.c.bf16 %v160, %v159
    %v175 = vpack.c.bf16 %v162, %v161
    %v176 = vpack.c.bf16 %v164, %v163
    %v177 = vpack.c.bf16 %v166, %v165
    %v178 = vpack.c.bf16 %v168, %v167
    %v179 = vpack.c.bf16 %v170, %v169
    %v180 = vpack.c.bf16 %v172, %v171
    %v181 = vld [vmem:[#allocation3] sm:$0xf]
    %v182 = vld [vmem:[#allocation3 + $0x4] sm:$0xf]
    %v183 = vld [vmem:[#allocation3 + $0x8] sm:$0x3]
    %v184 = vld [vmem:[%s3] sm:$0x1]
    %v186 = vlaneseq
    %v187 = vshrl.u32 %v186, 7
    %v188 = vsub.s32 0, %v187
    %v189 = vrot.slane %v184, %v188
    %v194 = vunpack.c.l.b16 %v181
    %v195 = vunpack.c.l.b16 %v182
    %v196 = vunpack.c.l.b16 %v183
    %v197 = vpack.c.b16 %v195, %v194
    %v198 = vpack.c.b16 %v196, %v196
    %vm200 = vcmask 162816
    %v202 = vsel %vm200, %v173, 0
    %v205 = vsel %vm200, %v174, 0
    %v208 = vsel %vm200, %v175, 0
    %v211 = vsel %vm200, %v176, 0
    %v214 = vsel %vm200, %v177, 0
    %v217 = vsel %vm200, %v178, 0
    %v220 = vsel %vm200, %v179, 0
    %v223 = vsel %vm200, %v180, 0
    %vm225 = vcmask 1041408
    %v227 = vsel %vm225, %v198, 0
    %229 = vmatprep.subr.bf16.mxu0 0
    %230 = vmatpush1.bf16.msra.mxu0 %v197
    %231 = vmatprep.subr.bf16.mxu0 0
    %232 = vmatpush1.bf16.msra.mxu0 %v227
    %233 = vmatprep.subr.bf16.mxu0 0
    %234 = vmatpush1.bf16.msra.mxu0 0
    %235 = vmatprep.subr.bf16.mxu0 0
    %236 = vmatpush1.bf16.msra.mxu0 0
    %237 = vmatprep.subr.bf16.mxu0 0
    %238 = vmatpush1.bf16.msra.mxu0 0
    %239 = vmatprep.subr.bf16.mxu0 0
    %240 = vmatpush1.bf16.msra.mxu0 0
    %241 = vmatprep.subr.bf16.mxu0 0
    %242 = vmatpush1.bf16.msra.mxu0 0
    %243 = vmatprep.subr.bf16.mxu0 0
    %244 = vmatpush1.bf16.msra.mxu0 0
    %245 = vmatprep.subr.bf16.mxu0 0
    %246 = vmatpush1.bf16.msra.mxu0 0
    %247 = vmatprep.subr.bf16.mxu0 0
    %248 = vmatpush1.bf16.msra.mxu0 0
    %249 = vmatprep.subr.bf16.mxu0 0
    %250 = vmatpush1.bf16.msra.mxu0 0
    %251 = vmatprep.subr.bf16.mxu0 0
    %252 = vmatpush1.bf16.msra.mxu0 0
    %253 = vmatprep.subr.bf16.mxu0 0
    %254 = vmatpush1.bf16.msra.mxu0 0
    %255 = vmatprep.subr.bf16.mxu0 0
    %256 = vmatpush1.bf16.msra.mxu0 0
    %257 = vmatprep.subr.bf16.mxu0 0
    %258 = vmatpush1.bf16.msra.mxu0 0
    %259 = vmatprep.subr.bf16.mxu0 0
    %260 = vmatpush1.bf16.msra.mxu0 0
    %261 = vmatprep.mubr.bf16.mxu0 0
    %262 = vmatmul.mubr.bf16.gmra.mrb[0].mxu0 %v202
    %v263 = vpop.f32.mrb[0].mxu0
    %v264 = vadd.f32 %v189, %v263
    %v265 = vpop.f32.mrb[0].mxu0
    %v266 = vpop.f32.mrb[0].mxu0
    %v267 = vadd.f32 %v189, %v266
    %v268 = vpop.f32.mrb[0].mxu0
    %269 = vmatprep.mubr.bf16.mxu0 0
    %270 = vmatmul.mubr.bf16.gmra.mrb[0].mxu0 %v205
    %v271 = vpop.f32.mrb[0].mxu0
    %v272 = vadd.f32 %v189, %v271
    %v273 = vpop.f32.mrb[0].mxu0
    %v274 = vpop.f32.mrb[0].mxu0
    %v275 = vadd.f32 %v189, %v274
    %v276 = vpop.f32.mrb[0].mxu0
    %277 = vmatprep.mubr.bf16.mxu0 0
    %278 = vmatmul.mubr.bf16.gmra.mrb[0].mxu0 %v208
    %v279 = vpop.f32.mrb[0].mxu0
    %v280 = vadd.f32 %v189, %v279
    %v281 = vpop.f32.mrb[0].mxu0
    %v282 = vpop.f32.mrb[0].mxu0
    %v283 = vadd.f32 %v189, %v282
    %v284 = vpop.f32.mrb[0].mxu0
    %285 = vmatprep.mubr.bf16.mxu0 0
    %286 = vmatmul.mubr.bf16.gmra.mrb[0].mxu0 %v211
    %v287 = vpop.f32.mrb[0].mxu0
    %v288 = vadd.f32 %v189, %v287
    %v289 = vpop.f32.mrb[0].mxu0
    %v290 = vpop.f32.mrb[0].mxu0
    %v291 = vadd.f32 %v189, %v290
    %v292 = vpop.f32.mrb[0].mxu0
    %293 = vmatprep.mubr.bf16.mxu0 0
    %294 = vmatmul.mubr.bf16.gmra.mrb[0].mxu0 %v214
    %v295 = vpop.f32.mrb[0].mxu0
    %v296 = vadd.f32 %v189, %v295
    %v297 = vpop.f32.mrb[0].mxu0
    %v298 = vpop.f32.mrb[0].mxu0
    %v299 = vadd.f32 %v189, %v298
    %v300 = vpop.f32.mrb[0].mxu0
    %301 = vmatprep.mubr.bf16.mxu0 0
    %302 = vmatmul.mubr.bf16.gmra.mrb[0].mxu0 %v217
    %v303 = vpop.f32.mrb[0].mxu0
    %v304 = vadd.f32 %v189, %v303
    %v305 = vpop.f32.mrb[0].mxu0
    %v306 = vpop.f32.mrb[0].mxu0
    %v307 = vadd.f32 %v189, %v306
    %v308 = vpop.f32.mrb[0].mxu0
    %309 = vmatprep.mubr.bf16.mxu0 0
    %310 = vmatmul.mubr.bf16.gmra.mrb[0].mxu0 %v220
    %v311 = vpop.f32.mrb[0].mxu0
    %v312 = vadd.f32 %v189, %v311
    %v313 = vpop.f32.mrb[0].mxu0
    %v314 = vpop.f32.mrb[0].mxu0
    %v315 = vadd.f32 %v189, %v314
    %v316 = vpop.f32.mrb[0].mxu0
    %317 = vmatprep.mubr.bf16.mxu0 0
    %318 = vmatmul.mubr.bf16.gmra.mrb[0].mxu0 %v223
    %v319 = vpop.f32.mrb[0].mxu0
    %v320 = vadd.f32 %v189, %v319
    %v321 = vpop.f32.mrb[0].mxu0
    %v322 = vpop.f32.mrb[0].mxu0
    %v323 = vadd.f32 %v189, %v322
    %v324 = vpop.f32.mrb[0].mxu0
    %325 = vdwg.mxu0
    %v326 = vmax.f32 %v264, 0.0
    %v327 = vmax.f32 %v267, 0.0
    %v328 = vmax.f32 %v272, 0.0
    %v329 = vmax.f32 %v275, 0.0
    %v330 = vmax.f32 %v280, 0.0
    %v331 = vmax.f32 %v283, 0.0
    %v332 = vmax.f32 %v288, 0.0
    %v333 = vmax.f32 %v291, 0.0
    %v334 = vmax.f32 %v296, 0.0
    %v335 = vmax.f32 %v299, 0.0
    %v336 = vmax.f32 %v304, 0.0
    %v337 = vmax.f32 %v307, 0.0
    %v338 = vmax.f32 %v312, 0.0
    %v339 = vmax.f32 %v315, 0.0
    %v340 = vmax.f32 %v320, 0.0
    %v341 = vmax.f32 %v323, 0.0
    %v342 = vpack.c.bf16 %v327, %v326
    %v343 = vpack.c.bf16 %v329, %v328
    %v344 = vpack.c.bf16 %v331, %v330
    %v345 = vpack.c.bf16 %v333, %v332
    %v346 = vpack.c.bf16 %v335, %v334
    %v347 = vpack.c.bf16 %v337, %v336
    %v348 = vpack.c.bf16 %v339, %v338
    %v349 = vpack.c.bf16 %v341, %v340
    %v350 = vld [vmem:[#allocation5] sm:$0xf]
    %v351 = vld [vmem:[#allocation5 + $0x4] sm:$0xf]
    %v352 = vld [vmem:[#allocation5 + $0x8] sm:$0xf]
    %v353 = vld [vmem:[#allocation5 + $0xc] sm:$0xf]
    %v354 = vld [vmem:[#allocation5 + $0x10] sm:$0xf]
    %v355 = vld [vmem:[#allocation5 + $0x14] sm:$0xf]
    %v356 = vld [vmem:[#allocation5 + $0x18] sm:$0xf]
    %v357 = vld [vmem:[#allocation5 + $0x1c] sm:$0xf]
    %v358 = vld [vmem:[#allocation5 + $0x20] sm:$0xf]
    %v359 = vld [vmem:[#allocation5 + $0x24] sm:$0xf]
    %v360 = vld [vmem:[#allocation5 + $0x28] sm:$0xf]
    %v361 = vld [vmem:[#allocation5 + $0x2c] sm:$0xf]
    %v362 = vld [vmem:[#allocation5 + $0x30] sm:$0xf]
    %v363 = vld [vmem:[#allocation5 + $0x34] sm:$0xf]
    %v364 = vld [vmem:[#allocation5 + $0x38] sm:$0xf]
    %v365 = vld [vmem:[#allocation5 + $0x3c] sm:$0xf]
    %v366 = vld [vmem:[%s5] sm:$0x1]
    %v368 = vlaneseq
    %v369 = vshrl.u32 %v368, 7
    %v370 = vsub.s32 0, %v369
    %v371 = vrot.slane %v366, %v370
    %v389 = vunpack.c.l.b16 %v350
    %v390 = vunpack.c.l.b16 %v351
    %v391 = vunpack.c.l.b16 %v352
    %v392 = vunpack.c.l.b16 %v353
    %v393 = vunpack.c.l.b16 %v354
    %v394 = vunpack.c.l.b16 %v355
    %v395 = vunpack.c.l.b16 %v356
    %v396 = vunpack.c.l.b16 %v357
    %v397 = vunpack.c.l.b16 %v358
    %v398 = vunpack.c.l.b16 %v359
    %v399 = vunpack.c.l.b16 %v360
    %v400 = vunpack.c.l.b16 %v361
    %v401 = vunpack.c.l.b16 %v362
    %v402 = vunpack.c.l.b16 %v363
    %v403 = vunpack.c.l.b16 %v364
    %v404 = vunpack.c.l.b16 %v365
    %v405 = vpack.c.b16 %v390, %v389
    %v406 = vpack.c.b16 %v392, %v391
    %v407 = vpack.c.b16 %v394, %v393
    %v408 = vpack.c.b16 %v396, %v395
    %v409 = vpack.c.b16 %v398, %v397
    %v410 = vpack.c.b16 %v400, %v399
    %v411 = vpack.c.b16 %v402, %v401
    %v412 = vpack.c.b16 %v404, %v403
    %421 = vmatprep.subr.bf16.mxu0 0
    %422 = vmatpush1.bf16.msra.mxu0 %v405
    %423 = vmatprep.subr.bf16.mxu0 0
    %424 = vmatpush1.bf16.msra.mxu0 %v406
    %425 = vmatprep.subr.bf16.mxu0 0
    %426 = vmatpush1.bf16.msra.mxu0 %v407
    %427 = vmatprep.subr.bf16.mxu0 0
    %428 = vmatpush1.bf16.msra.mxu0 %v408
    %429 = vmatprep.subr.bf16.mxu0 0
    %430 = vmatpush1.bf16.msra.mxu0 %v409
    %431 = vmatprep.subr.bf16.mxu0 0
    %432 = vmatpush1.bf16.msra.mxu0 %v410
    %433 = vmatprep.subr.bf16.mxu0 0
    %434 = vmatpush1.bf16.msra.mxu0 %v411
    %435 = vmatprep.subr.bf16.mxu0 0
    %436 = vmatpush1.bf16.msra.mxu0 %v412
    %437 = vmatprep.subr.bf16.mxu0 0
    %438 = vmatpush1.bf16.msra.mxu0 0
    %439 = vmatprep.subr.bf16.mxu0 0
    %440 = vmatpush1.bf16.msra.mxu0 0
    %441 = vmatprep.subr.bf16.mxu0 0
    %442 = vmatpush1.bf16.msra.mxu0 0
    %443 = vmatprep.subr.bf16.mxu0 0
    %444 = vmatpush1.bf16.msra.mxu0 0
    %445 = vmatprep.subr.bf16.mxu0 0
    %446 = vmatpush1.bf16.msra.mxu0 0
    %447 = vmatprep.subr.bf16.mxu0 0
    %448 = vmatpush1.bf16.msra.mxu0 0
    %449 = vmatprep.subr.bf16.mxu0 0
    %450 = vmatpush1.bf16.msra.mxu0 0
    %451 = vmatprep.subr.bf16.mxu0 0
    %452 = vmatpush1.bf16.msra.mxu0 0
    %453 = vmatprep.mubr.bf16.mxu0 0
    %454 = vmatmul.mubr.bf16.gmra.mrb[0].mxu0 %v342
    %v455 = vpop.f32.mrb[0].mxu0
    %v456 = vadd.f32 %v371, %v455
    %v457 = vpop.f32.mrb[0].mxu0
    %v458 = vpop.f32.mrb[0].mxu0
    %v459 = vadd.f32 %v371, %v458
    %v460 = vpop.f32.mrb[0].mxu0
    %461 = vmatprep.mubr.bf16.mxu0 0
    %462 = vmatmul.mubr.bf16.gmra.mrb[0].mxu0 %v343
    %v463 = vpop.f32.mrb[0].mxu0
    %v464 = vadd.f32 %v371, %v463
    %v465 = vpop.f32.mrb[0].mxu0
    %v466 = vpop.f32.mrb[0].mxu0
    %v467 = vadd.f32 %v371, %v466
    %v468 = vpop.f32.mrb[0].mxu0
    %469 = vmatprep.mubr.bf16.mxu0 0
    %470 = vmatmul.mubr.bf16.gmra.mrb[0].mxu0 %v344
    %v471 = vpop.f32.mrb[0].mxu0
    %v472 = vadd.f32 %v371, %v471
    %v473 = vpop.f32.mrb[0].mxu0
    %v474 = vpop.f32.mrb[0].mxu0
    %v475 = vadd.f32 %v371, %v474
    %v476 = vpop.f32.mrb[0].mxu0
    %477 = vmatprep.mubr.bf16.mxu0 0
    %478 = vmatmul.mubr.bf16.gmra.mrb[0].mxu0 %v345
    %v479 = vpop.f32.mrb[0].mxu0
    %v480 = vadd.f32 %v371, %v479
    %v481 = vpop.f32.mrb[0].mxu0
    %v482 = vpop.f32.mrb[0].mxu0
    %v483 = vadd.f32 %v371, %v482
    %v484 = vpop.f32.mrb[0].mxu0
    %485 = vmatprep.mubr.bf16.mxu0 0
    %486 = vmatmul.mubr.bf16.gmra.mrb[0].mxu0 %v346
    %v487 = vpop.f32.mrb[0].mxu0
    %v488 = vadd.f32 %v371, %v487
    %v489 = vpop.f32.mrb[0].mxu0
    %v490 = vpop.f32.mrb[0].mxu0
    %v491 = vadd.f32 %v371, %v490
    %v492 = vpop.f32.mrb[0].mxu0
    %493 = vmatprep.mubr.bf16.mxu0 0
    %494 = vmatmul.mubr.bf16.gmra.mrb[0].mxu0 %v347
    %v495 = vpop.f32.mrb[0].mxu0
    %v496 = vadd.f32 %v371, %v495
    %v497 = vpop.f32.mrb[0].mxu0
    %v498 = vpop.f32.mrb[0].mxu0
    %v499 = vadd.f32 %v371, %v498
    %v500 = vpop.f32.mrb[0].mxu0
    %501 = vmatprep.mubr.bf16.mxu0 0
    %502 = vmatmul.mubr.bf16.gmra.mrb[0].mxu0 %v348
    %v503 = vpop.f32.mrb[0].mxu0
    %v504 = vadd.f32 %v371, %v503
    %v505 = vpop.f32.mrb[0].mxu0
    %v506 = vpop.f32.mrb[0].mxu0
    %v507 = vadd.f32 %v371, %v506
    %v508 = vpop.f32.mrb[0].mxu0
    %509 = vmatprep.mubr.bf16.mxu0 0
    %510 = vmatmul.mubr.bf16.gmra.mrb[0].mxu0 %v349
    %v511 = vpop.f32.mrb[0].mxu0
    %v512 = vadd.f32 %v371, %v511
    %v513 = vpop.f32.mrb[0].mxu0
    %v514 = vpop.f32.mrb[0].mxu0
    %v515 = vadd.f32 %v371, %v514
    %v516 = vpop.f32.mrb[0].mxu0
    %517 = vdwg.mxu0
    %v518 = vmax.f32 %v456, 0.0
    %v519 = vmax.f32 %v459, 0.0
    %v520 = vmax.f32 %v464, 0.0
    %v521 = vmax.f32 %v467, 0.0
    %v522 = vmax.f32 %v472, 0.0
    %v523 = vmax.f32 %v475, 0.0
    %v524 = vmax.f32 %v480, 0.0
    %v525 = vmax.f32 %v483, 0.0
    %v526 = vmax.f32 %v488, 0.0
    %v527 = vmax.f32 %v491, 0.0
    %v528 = vmax.f32 %v496, 0.0
    %v529 = vmax.f32 %v499, 0.0
    %v530 = vmax.f32 %v504, 0.0
    %v531 = vmax.f32 %v507, 0.0
    %v532 = vmax.f32 %v512, 0.0
    %v533 = vmax.f32 %v515, 0.0
    %v534 = vld [vmem:[%s6] sm:$0x1]
    %v536 = vlaneseq
    %v537 = vshrl.u32 %v536, 7
    %v538 = vsub.s32 0, %v537
    %v539 = vrot.slane %v534, %v538
    %v541 = vmul.f32 %v518, %v539
    %v542 = vmul.f32 %v519, %v539
    %v543 = vmul.f32 %v520, %v539
    %v544 = vmul.f32 %v521, %v539
    %v545 = vmul.f32 %v522, %v539
    %v546 = vmul.f32 %v523, %v539
    %v547 = vmul.f32 %v524, %v539
    %v548 = vmul.f32 %v525, %v539
    %v549 = vmul.f32 %v526, %v539
    %v550 = vmul.f32 %v527, %v539
    %v551 = vmul.f32 %v528, %v539
    %v552 = vmul.f32 %v529, %v539
    %v553 = vmul.f32 %v530, %v539
    %v554 = vmul.f32 %v531, %v539
    %v555 = vmul.f32 %v532, %v539
    %v556 = vmul.f32 %v533, %v539
    %557 = vadd.xlane.f32.xlu0 %v541
    %v558 = vpop.xlane.xlu0 %557
    %559 = vadd.xlane.f32.xlu0 %v542
    %v560 = vpop.xlane.xlu0 %559
    %561 = vadd.xlane.f32.xlu0 %v543
    %v562 = vpop.xlane.xlu0 %561
    %563 = vadd.xlane.f32.xlu0 %v544
    %v564 = vpop.xlane.xlu0 %563
    %565 = vadd.xlane.f32.xlu0 %v545
    %v566 = vpop.xlane.xlu0 %565
    %567 = vadd.xlane.f32.xlu0 %v546
    %v568 = vpop.xlane.xlu0 %567
    %569 = vadd.xlane.f32.xlu0 %v547
    %v570 = vpop.xlane.xlu0 %569
    %571 = vadd.xlane.f32.xlu0 %v548
    %v572 = vpop.xlane.xlu0 %571
    %573 = vadd.xlane.f32.xlu0 %v549
    %v574 = vpop.xlane.xlu0 %573
    %575 = vadd.xlane.f32.xlu0 %v550
    %v576 = vpop.xlane.xlu0 %575
    %577 = vadd.xlane.f32.xlu0 %v551
    %v578 = vpop.xlane.xlu0 %577
    %579 = vadd.xlane.f32.xlu0 %v552
    %v580 = vpop.xlane.xlu0 %579
    %581 = vadd.xlane.f32.xlu0 %v553
    %v582 = vpop.xlane.xlu0 %581
    %583 = vadd.xlane.f32.xlu0 %v554
    %v584 = vpop.xlane.xlu0 %583
    %585 = vadd.xlane.f32.xlu0 %v555
    %v586 = vpop.xlane.xlu0 %585
    %587 = vadd.xlane.f32.xlu0 %v556
    %v588 = vpop.xlane.xlu0 %587
    %v589 = vld [vmem:[#allocation2] sm:$0x1]
    %v591 = vlaneseq
    %v592 = vshrl.u32 %v591, 7
    %v593 = vsub.s32 0, %v592
    %v594 = vrot.slane %v589, %v593
    %v596 = vadd.f32 %v558, %v594
    %v597 = vadd.f32 %v560, %v594
    %v598 = vadd.f32 %v562, %v594
    %v599 = vadd.f32 %v564, %v594
    %v600 = vadd.f32 %v566, %v594
    %v601 = vadd.f32 %v568, %v594
    %v602 = vadd.f32 %v570, %v594
    %v603 = vadd.f32 %v572, %v594
    %v604 = vadd.f32 %v574, %v594
    %v605 = vadd.f32 %v576, %v594
    %v606 = vadd.f32 %v578, %v594
    %v607 = vadd.f32 %v580, %v594
    %v608 = vadd.f32 %v582, %v594
    %v609 = vadd.f32 %v584, %v594
    %v610 = vadd.f32 %v586, %v594
    %v611 = vadd.f32 %v588, %v594
    %vm612 = vcmask 7168
    %613 = vst.msk [vmem:[%s8] sm:$0xff] %vm612, %v596
    %614 = vst.msk [vmem:[%s8 + $0x8] sm:$0xff] %vm612, %v597
    %615 = vst.msk [vmem:[%s8 + $0x10] sm:$0xff] %vm612, %v598
    %616 = vst.msk [vmem:[%s8 + $0x18] sm:$0xff] %vm612, %v599
    %617 = vst.msk [vmem:[%s8 + $0x20] sm:$0xff] %vm612, %v600
    %618 = vst.msk [vmem:[%s8 + $0x28] sm:$0xff] %vm612, %v601
    %619 = vst.msk [vmem:[%s8 + $0x30] sm:$0xff] %vm612, %v602
    %620 = vst.msk [vmem:[%s8 + $0x38] sm:$0xff] %vm612, %v603
    %621 = vst.msk [vmem:[%s8 + $0x40] sm:$0xff] %vm612, %v604
    %622 = vst.msk [vmem:[%s8 + $0x48] sm:$0xff] %vm612, %v605
    %623 = vst.msk [vmem:[%s8 + $0x50] sm:$0xff] %vm612, %v606
    %624 = vst.msk [vmem:[%s8 + $0x58] sm:$0xff] %vm612, %v607
    %625 = vst.msk [vmem:[%s8 + $0x60] sm:$0xff] %vm612, %v608
    %626 = vst.msk [vmem:[%s8 + $0x68] sm:$0xff] %vm612, %v609
    %627 = vst.msk [vmem:[%s8 + $0x70] sm:$0xff] %vm612, %v610
    %628 = vst.msk [vmem:[%s8 + $0x78] sm:$0xff] %vm612, %v611
    // Predicated region
    $region42: #{tpu_custom_call.1} parent=1 // pred_check
      _
    $region43: #{tpu_custom_call.1} parent=1 // pred_check_branch
      %630 = sbr.rel (0) target = $region45
    $region44: #{tpu_custom_call.1} parent=1 // pred_region
      _
    $region45: #{tpu_custom_call.1} parent=1 // pred_fallthru
      _
    // Predicated region
    $region46: #{tpu_custom_call.1} parent=1 // pred_check
      _
    $region47: #{tpu_custom_call.1} parent=1 // pred_check_branch
      %632 = sbr.rel (0) target = $region49
    $region48: #{tpu_custom_call.1} parent=1 // pred_region
      _
    $region49: #{tpu_custom_call.1} parent=1 // pred_fallthru
      _
    %633 = vsyncpa [#allocation4], 1
    %634 = vsyncpa [#allocation6], 1

</llo_original>
